<compile_context>
chip_gen: v6e
topology: v6e:2x2x1
jax: 0.10.0
libtpu: 0.0.40
codegen_flags: <defaults>
</compile_context>

<pallas_src>
import jax
import jax.numpy as jnp
from jax.experimental import pallas as pl
from jax.experimental.pallas import tpu as pltpu


def _cdiv(a: int, b: int) -> int:
    return (a + b - 1) // b


def _round_up(x: int, m: int) -> int:
    return _cdiv(x, m) * m


def _default_budgets():
    """(max_block_bytes, vmem_limit_bytes, input_buffer_count), per generation."""
    vmem = None
    try:
        info = pltpu.get_tpu_info()
        vmem = getattr(info, "vmem_capacity_bytes", None)
    except Exception:
        vmem = None
    if vmem is not None and vmem >= 100 * 1024 * 1024:
        # v5e / v6e: 128 MiB VMEM per TensorCore -> bigger blocks + 3-deep
        # input buffering (2 inputs x 3 bufs x 12 MiB = 72 MiB, well under the
        # 96 MiB scoped limit).
        return 12 * 1024 * 1024, 96 * 1024 * 1024, 3
    # v7x (64 MiB per TensorCore) or unknown chip: stay conservative.
    return 8 * 1024 * 1024, 48 * 1024 * 1024, 2


def _choose_tiling(n: int, d: int, itemsize: int, max_block_bytes: int,
                   min_row_steps: int = 4):
    """Pick (row_tile, d_tile) so one input block is <= max_block_bytes."""
    bytes_per_row = max(d * itemsize, 1)
    row_cap = (max_block_bytes // bytes_per_row) // 128 * 128
    if row_cap >= 128:
        # D fits untiled.  Take the biggest lane-aligned row tile within the
        # byte budget, but keep >= min_row_steps grid steps when N allows so
        # v7x's two TensorCores both get work and DMA/compute overlap kicks in.
        per_step = max(128, _round_up(_cdiv(n, min_row_steps), 128))
        return min(row_cap, per_step), d
    # Very wide D: keep a modest lane-aligned row tile and tile D instead.
    row_tile = min(256, max(128, _round_up(n, 128)))
    d_tile = max(128, (max_block_bytes // (row_tile * itemsize)) // 128 * 128)
    return row_tile, d_tile


def _bhatt_kernel_single(p_ref, q_ref, o_ref):
    """Single D tile covering all features: no accumulator scratch needed."""
    pf = p_ref[...].astype(jnp.float32)
    qf = q_ref[...].astype(jnp.float32)
    # VPU multiply + EUP sqrt + XLU cross-lane sum; no MXU involvement.
    s = jnp.sum(jnp.sqrt(pf * qf), axis=1, keepdims=True)   # (row_tile, 1)
    # Lane-dense store: (row_tile, 1) -> (1, row_tile).
    o_ref[...] = jnp.transpose(s).astype(o_ref.dtype)


def _make_bhatt_kernel_tiled_d(d_total: int, d_tile: int, need_mask: bool):
    """Kernel for grid = (row_tiles, d_tiles) with an f32 accumulator."""
    def kernel(p_ref, q_ref, o_ref, acc_ref):
        k = pl.program_id(1)

        @pl.when(k == 0)
        def _init():
            acc_ref[...] = jnp.zeros_like(acc_ref)

        pf = p_ref[...].astype(jnp.float32)
        qf = q_ref[...].astype(jnp.float32)
        prod = pf * qf
        if need_mask:
            # Last D tile is ragged: zero the out-of-range columns *before*
            # sqrt so (possibly negative) garbage padding can't become NaN in
            # a real row.  For non-last tiles the mask is all-true (cheap VPU).
            col = jax.lax.broadcasted_iota(jnp.int32, prod.shape, 1)
            prod = jnp.where(col < (d_total - k * d_tile), prod, 0.0)
        acc_ref[...] += jnp.sum(jnp.sqrt(prod), axis=1, keepdims=True)

        @pl.when(k == pl.num_programs(1) - 1)
        def _finalize():
            # Lane-dense store: (row_tile, 1) -> (1, row_tile).
            o_ref[...] = jnp.transpose(acc_ref[...]).astype(o_ref.dtype)

    return kernel


def _input_spec(block_shape, index_map, buffer_count):
    """BlockSpec with optional 3-deep pipelining on 128 MiB-VMEM generations."""
    if buffer_count > 2 and hasattr(pl, "Buffered"):
        try:
            return pl.BlockSpec(block_shape, index_map,
                                pipeline_mode=pl.Buffered(buffer_count))
        except TypeError:
            pass  # API without pipeline_mode: fall back to default 2-deep.
    return pl.BlockSpec(block_shape, index_map)


def bhattacharyya(p: jax.Array, q: jax.Array, *,
                  row_tile: int | None = None,
                  d_tile: int | None = None,
                  max_block_bytes: int | None = None,
                  vmem_limit_bytes: int | None = None,
                  out_dtype=jnp.float32) -> jax.Array:
    """out[i] = sum_j sqrt(p[i, j] * q[i, j]).  Equivalent to the torch module
    (output defaults to float32 since accumulation is f32 anyway; pass
    out_dtype=p.dtype to match torch's dtype exactly)."""
    assert p.ndim == 2, p.ndim
    assert p.shape == q.shape, f"{p.shape} {q.shape}"
    n, d = p.shape
    itemsize = jnp.dtype(p.dtype).itemsize

    auto_block, auto_limit, in_buffers = _default_budgets()
    max_block_bytes = auto_block if max_block_bytes is None else max_block_bytes
    vmem_limit_bytes = auto_limit if vmem_limit_bytes is None else vmem_limit_bytes

    auto_rt, auto_dt = _choose_tiling(n, d, itemsize, max_block_bytes)
    row_tile = auto_rt if row_tile is None else row_tile
    d_tile = auto_dt if d_tile is None else d_tile

    # --- layout constraints (no host-side padding) --------------------------
    if row_tile >= n:
        # Single row step: the block covers the full row dim exactly (any N is
        # a legal block dim when it equals the full array dim).
        row_tile = n
        row_steps = 1
    else:
        assert row_tile % 128 == 0, (
            f"row_tile={row_tile} must be a multiple of 128 when it does not "
            f"cover all {n} rows (lane-dense output block)")
        row_steps = _cdiv(n, row_tile)

    if d_tile >= d:
        d_tile = d
        d_steps = 1
    else:
        assert d_tile % 128 == 0, d_tile
        d_steps = _cdiv(d, d_tile)

    out_shape = jax.ShapeDtypeStruct((1, n), out_dtype)

    if d_steps == 1:
        grid = (row_steps,)
        in_specs = [_input_spec((row_tile, d), lambda i: (i, 0), in_buffers),
                    _input_spec((row_tile, d), lambda i: (i, 0), in_buffers)]
        out_specs = pl.BlockSpec((1, row_tile), lambda i: (0, i))
        scratch_shapes = []
        kernel = _bhatt_kernel_single
        dim_sem = ("parallel",)
    else:
        grid = (row_steps, d_steps)   # reduction axis (D) innermost
        in_specs = [_input_spec((row_tile, d_tile), lambda i, k: (i, k), in_buffers),
                    _input_spec((row_tile, d_tile), lambda i, k: (i, k), in_buffers)]
        out_specs = pl.BlockSpec((1, row_tile), lambda i, k: (0, i))
        scratch_shapes = [pltpu.VMEM((row_tile, 1), jnp.float32)]
        kernel = _make_bhatt_kernel_tiled_d(d, d_tile,
                                            need_mask=(d % d_tile != 0))
        dim_sem = ("parallel", "arbitrary")

    out2d = pl.pallas_call(
        kernel,
        out_shape=out_shape,
        grid_spec=pltpu.PrefetchScalarGridSpec(
            num_scalar_prefetch=0,
            grid=grid,
            in_specs=in_specs,
            out_specs=out_specs,
            scratch_shapes=scratch_shapes,
        ),
        compiler_params=pltpu.CompilerParams(
            dimension_semantics=dim_sem,
            vmem_limit_bytes=vmem_limit_bytes,
        ),
    )(p, q)

    # .view(-1) equivalent; output is exactly N long (no padding to strip).
    return out2d.reshape(-1)


if __name__ == "__main__":
    key = jax.random.PRNGKey(0)

    def make_inputs(n, d, dtype):
        kp, kq = jax.random.split(jax.random.fold_in(key, n * 10007 + d))
        pp = jax.random.uniform(kp, (n, d), dtype=jnp.float32)
        qq = jax.random.uniform(kq, (n, d), dtype=jnp.float32)
        pp = pp / pp.sum(axis=1, keepdims=True)
        qq = qq / qq.sum(axis=1, keepdims=True)
        return pp.astype(dtype), qq.astype(dtype)

    def ref_fn(pp, qq):
        return jnp.sqrt(pp.astype(jnp.float32) * qq.astype(jnp.float32)).sum(axis=1)

    # 1) Small f32 case: single row block (row_tile == N), single D tile,
    #    specialized no-scratch kernel.
    p, q = make_inputs(16, 256, jnp.float32)
    out = jax.block_until_ready(bhattacharyya(p, q))
    assert out.shape == (16,), out.shape
    assert jnp.allclose(out, ref_fn(p, q), atol=1e-6, rtol=1e-6)

    # 2) Non-divisible N and D with explicit small tiles: ragged last row and
    #    D tiles handled in-kernel (iota column mask, dropped output lanes),
    #    f32 accumulator across D steps — no host-side padding anywhere.
    p, q = make_inputs(300, 320, jnp.float32)
    out = jax.block_until_ready(bhattacharyya(p, q, row_tile=128, d_tile=128))
    assert out.shape == (300,), out.shape
    assert jnp.allclose(out, ref_fn(p, q), atol=1e-5, rtol=1e-5)

    # 3) Auto tiling with multiple row grid steps ("parallel" axis -> both v7x
    #    TensorCores) and a lane-dense multi-block output.
    p, q = make_inputs(1024, 512, jnp.float32)
    out = jax.block_until_ready(bhattacharyya(p, q))
    assert out.shape == (1024,), out.shape
    assert jnp.allclose(out, ref_fn(p, q), atol=1e-5, rtol=1e-5)

    # 4) bf16 transport (halves HBM bytes) with f32 accumulation + f32 output.
    p, q = make_inputs(64, 256, jnp.bfloat16)
    out = jax.block_until_ready(bhattacharyya(p, q))
    assert out.shape == (64,), out.shape
    assert out.dtype == jnp.float32, out.dtype
    assert jnp.allclose(out, ref_fn(p, q), atol=2e-2, rtol=2e-2)

    print("KERNEL_OK")
</pallas_src>

<mosaic_0001>
module attributes {stable_mosaic.version = 11 : i64} {
  func.func @_bhatt_kernel_single(%arg0: i32, %arg1: memref<16x256xf32, #tpu.memory_space<vmem>>, %arg2: memref<16x256xf32, #tpu.memory_space<vmem>>, %arg3: memref<1x16xf32, #tpu.memory_space<vmem>>) attributes {dimension_semantics = [#tpu.dimension_semantics<parallel>], iteration_bounds = array<i64: 1>, scalar_prefetch = 0 : i64, scratch_operands = 0 : i64, tpu.core_type = #tpu.core_type<tc>, window_params = [{transform_indices = @transform_0, window_bounds = array<i64: 16, 256>}, {transform_indices = @transform_1, window_bounds = array<i64: 16, 256>}, {transform_indices = @transform_2, window_bounds = array<i64: 1, 16>}]} {
    %c0 = arith.constant 0 : index
    %c0_0 = arith.constant 0 : index
    %0 = vector.load %arg1[%c0, %c0_0] : memref<16x256xf32, #tpu.memory_space<vmem>>, vector<16x256xf32>
    %c0_1 = arith.constant 0 : index
    %c0_2 = arith.constant 0 : index
    %1 = vector.load %arg2[%c0_1, %c0_2] : memref<16x256xf32, #tpu.memory_space<vmem>>, vector<16x256xf32>
    %2 = arith.mulf %0, %1 : vector<16x256xf32>
    %3 = math.sqrt %2 : vector<16x256xf32>
    %cst = arith.constant dense<0.000000e+00> : vector<16xf32>
    %4 = vector.multi_reduction <add>, %3, %cst [1] : vector<16x256xf32> to vector<16xf32>
    %5 = vector.shape_cast %4 : vector<16xf32> to vector<16x1xf32>
    %6 = tpu.transpose %5, [1, 0] : vector<16x1xf32> -> vector<1x16xf32>
    %c0_3 = arith.constant 0 : index
    %c0_4 = arith.constant 0 : index
    %7 = vector.load %arg3[%c0_3, %c0_4] : memref<1x16xf32, #tpu.memory_space<vmem>>, vector<1x16xf32>
    tpu.vector_store %arg3[%c0_3, %c0_4], %6 {strides = array<i32>} : memref<1x16xf32, #tpu.memory_space<vmem>>, vector<1x16xf32>,
    return
  }
  func.func @transform_0(%arg0: i32) -> (i32, i32) {
    %c0_i32 = arith.constant 0 : i32
    %c0_i32_0 = arith.constant 0 : i32
    return %arg0, %c0_i32 : i32, i32
  }
  func.func @transform_1(%arg0: i32) -> (i32, i32) {
    %c0_i32 = arith.constant 0 : i32
    %c0_i32_0 = arith.constant 0 : i32
    return %arg0, %c0_i32 : i32, i32
  }
  func.func @transform_2(%arg0: i32) -> (i32, i32) {
    %c0_i32 = arith.constant 0 : i32
    %c0_i32_0 = arith.constant 0 : i32
    return %c0_i32, %arg0 : i32, i32
  }
}

</mosaic_0001>

<llo_original>
// kernel: tpu_custom_call.1
$region0: #{tpu_custom_call.1}
  #allocation0 [shape = 'u32[]', space=smem, size = 0x4, offset = 0x4, fixed_abs, tag = 'smem constant byte address 0x4 - core index']
  #allocation1 [shape = 'u32[144,128]{1,0:T(1,128)}', space=vmem, size = 0x12000, scoped, tag = 'internal scratch']
  %s0 = inlined_call_operand.hbm [shape: f32[16,256], index: 0, kind: input, shape index: {}]
  %s1 = inlined_call_operand.hbm [shape: f32[16,256], index: 1, kind: input, shape index: {}]
  %s2 = inlined_call_operand.hbm [shape: f32[1,16], index: 2, kind: output, shape index: {}]
  %s3 = sld [smem:[#allocation0]]
  $region26: #{tpu_custom_call.1} parent=0
    _
  %s5 = ssub.s32 1, %s3
  %s6 = scalar_select 0, %s5, %s3
  $region1: #{tpu_custom_call.1} parent=0
    #allocation2 [shape = 'u8[16384]{0}', space=vmem, size = 0x4000, scoped, tag = 'input window, operand 0, single buffered']
    #allocation3 [shape = 's32[1]{0}', space=sflag, size = 0x4, scoped, tag = 'scoped memory for tpu_custom_call.1']
    #allocation4 [shape = 's32[1]{0}', space=sflag, size = 0x4, scoped, tag = 'scoped memory for tpu_custom_call.1']
    #allocation5 [shape = 'u8[16384]{0}', space=vmem, size = 0x4000, scoped, tag = 'input window, operand 1, single buffered']
    #allocation6 [shape = 's32[1]{0}', space=sflag, size = 0x4, scoped, tag = 'scoped memory for tpu_custom_call.1']
    #allocation7 [shape = 'u8[512]{0}', space=vmem, size = 0x400, scoped, tag = 'output window, operand 0, single buffered']
    %7 = vsyncpa [#allocation3], 0
    %8 = vsyncpa [#allocation6], 0
    %9 = vsyncpa [#allocation4], 0
    // Predicated region
    $region2: #{tpu_custom_call.1} parent=1 // pred_check
      _
    $region3: #{tpu_custom_call.1} parent=1 // pred_check_branch
      %11 = sbr.rel (0) target = $region5
    $region4: #{tpu_custom_call.1} parent=1 // pred_region
      %s13 = ssub.s32 512, 512
      %14 = vsyncadd [#allocation3], %s13
      %s15 = sshll.u32 [#allocation2], 4
      %s16 = int_to_ptr.vmem [resolvable:$true] %s15
      %21 = dma.hbm_to_vmem [thread:$0]  %s0, 512, %s16, [#allocation3], 256, 256, 16
    $region5: #{tpu_custom_call.1} parent=1 // pred_fallthru
      _
    // Predicated region
    $region6: #{tpu_custom_call.1} parent=1 // pred_check
      _
    $region7: #{tpu_custom_call.1} parent=1 // pred_check_branch
      %23 = sbr.rel (0) target = $region9
    $region8: #{tpu_custom_call.1} parent=1 // pred_region
      %s25 = ssub.s32 512, 512
      %26 = vsyncadd [#allocation6], %s25
      %s27 = sshll.u32 [#allocation5], 4
      %s28 = int_to_ptr.vmem [resolvable:$true] %s27
      %33 = dma.hbm_to_vmem [thread:$0]  %s1, 512, %s28, [#allocation6], 256, 256, 16
    $region9: #{tpu_custom_call.1} parent=1 // pred_fallthru
      _
    // Predicated region
    $region10: #{tpu_custom_call.1} parent=1 // pred_check
      _
    $region11: #{tpu_custom_call.1} parent=1 // pred_check_branch
      %35 = sbr.rel (0) target = $region13
    $region12: #{tpu_custom_call.1} parent=1 // pred_region
      %36 = dma.done [#allocation3], 512
    $region13: #{tpu_custom_call.1} parent=1 // pred_fallthru
      _
    // Predicated region
    $region14: #{tpu_custom_call.1} parent=1 // pred_check
      _
    $region15: #{tpu_custom_call.1} parent=1 // pred_check_branch
      %38 = sbr.rel (0) target = $region17
    $region16: #{tpu_custom_call.1} parent=1 // pred_region
      %39 = dma.done [#allocation6], 512
    $region17: #{tpu_custom_call.1} parent=1 // pred_fallthru
      _
    %v40 = vld [vmem:[#allocation2] sm:$0xff]
    %v41 = vld [vmem:[#allocation2 + $0x8] sm:$0xff]
    %v42 = vld [vmem:[#allocation2 + $0x10] sm:$0xff]
    %v43 = vld [vmem:[#allocation2 + $0x18] sm:$0xff]
    %v44 = vld [vmem:[#allocation5] sm:$0xff]
    %v45 = vld [vmem:[#allocation5 + $0x8] sm:$0xff]
    %v46 = vld [vmem:[#allocation5 + $0x10] sm:$0xff]
    %v47 = vld [vmem:[#allocation5 + $0x18] sm:$0xff]
    %v48 = vmul.f32 %v40, %v44
    %v49 = vmul.f32 %v41, %v45
    %v50 = vmul.f32 %v42, %v46
    %v51 = vmul.f32 %v43, %v47
    %v52 = vrsqrt.pop %v48
    %v53 = vmul.f32 %v48, %v52
    %vm54 = vcmp.eq.f32.partialorder %v48, inf
    %v55 = vsel %vm54, %v48, %v53
    %vm56 = vcmp.eq.f32.partialorder %v48, 0.0
    %v57 = vand.u32 %v48, 2147483648
    %v58 = vsel %vm56, %v57, %v55
    %v59 = vrsqrt.pop %v49
    %v60 = vmul.f32 %v49, %v59
    %vm61 = vcmp.eq.f32.partialorder %v49, inf
    %v62 = vsel %vm61, %v49, %v60
    %vm63 = vcmp.eq.f32.partialorder %v49, 0.0
    %v64 = vand.u32 %v49, 2147483648
    %v65 = vsel %vm63, %v64, %v62
    %v66 = vrsqrt.pop %v50
    %v67 = vmul.f32 %v50, %v66
    %vm68 = vcmp.eq.f32.partialorder %v50, inf
    %v69 = vsel %vm68, %v50, %v67
    %vm70 = vcmp.eq.f32.partialorder %v50, 0.0
    %v71 = vand.u32 %v50, 2147483648
    %v72 = vsel %vm70, %v71, %v69
    %v73 = vrsqrt.pop %v51
    %v74 = vmul.f32 %v51, %v73
    %vm75 = vcmp.eq.f32.partialorder %v51, inf
    %v76 = vsel %vm75, %v51, %v74
    %vm77 = vcmp.eq.f32.partialorder %v51, 0.0
    %v78 = vand.u32 %v51, 2147483648
    %v79 = vsel %vm77, %v78, %v76
    %v80 = vadd.f32 %v58, %v65
    %81 = vadd.xlane.f32.xlu0 %v80
    %v82 = vpop.xlane.xlu0 %81
    %v83 = vadd.f32 %v72, %v79
    %84 = vadd.xlane.f32.xlu0 %v83
    %v85 = vpop.xlane.xlu0 %84
    %86 = vxpose.xlu0.b32.start [1/16] %v82, 128
    %87 = vxpose.xlu0.b32.cont [2/16] %v85, 128
    %88 = vxpose.xlu0.b32.cont [3/16] 0.0, 128
    %89 = vxpose.xlu0.b32.cont [4/16] 0.0, 128
    %90 = vxpose.xlu0.b32.cont [5/16] 0.0, 128
    %91 = vxpose.xlu0.b32.cont [6/16] 0.0, 128
    %92 = vxpose.xlu0.b32.cont [7/16] 0.0, 128
    %93 = vxpose.xlu0.b32.cont [8/16] 0.0, 128
    %94 = vxpose.xlu0.b32.cont [9/16] 0.0, 128
    %95 = vxpose.xlu0.b32.cont [10/16] 0.0, 128
    %96 = vxpose.xlu0.b32.cont [11/16] 0.0, 128
    %97 = vxpose.xlu0.b32.cont [12/16] 0.0, 128
    %98 = vxpose.xlu0.b32.cont [13/16] 0.0, 128
    %99 = vxpose.xlu0.b32.cont [14/16] 0.0, 128
    %100 = vxpose.xlu0.b32.cont [15/16] 0.0, 128
    %101 = vxpose.xlu0.b32.end [16/16] 0.0, 128
    %v102 = vpop.trf.xlu0
    %v103 = vpop.trf.xlu0
    %v104 = vpop.trf.xlu0
    %v105 = vpop.trf.xlu0
    %v106 = vpop.trf.xlu0
    %v107 = vpop.trf.xlu0
    %v108 = vpop.trf.xlu0
    %v109 = vpop.trf.xlu0
    %v110 = vpop.trf.xlu0
    %v111 = vpop.trf.xlu0
    %v112 = vpop.trf.xlu0
    %v113 = vpop.trf.xlu0
    %v114 = vpop.trf.xlu0
    %v115 = vpop.trf.xlu0
    %v116 = vpop.trf.xlu0
    %v117 = vpop.trf.xlu0
    %vm118 = vcmask 122880
    %119 = vst.msk [vmem:[#allocation7] sm:$0x1] %vm118, %v102
    // Predicated region
    $region18: #{tpu_custom_call.1} parent=1 // pred_check
      _
    $region19: #{tpu_custom_call.1} parent=1 // pred_check_branch
      %121 = sbr.rel (0) target = $region21
    $region20: #{tpu_custom_call.1} parent=1 // pred_region
      %s123 = ssub.s32 16, 16
      %124 = vsyncadd [#allocation4], %s123
      %s126 = sshll.u32 [#allocation7], 4
      %s127 = int_to_ptr.vmem [resolvable:$true] %s126
      %129 = dma.vmem_to_hbm [thread:$0]  %s127, 16, %s2, [#allocation4]
    $region21: #{tpu_custom_call.1} parent=1 // pred_fallthru
      _
    // Predicated region
    $region22: #{tpu_custom_call.1} parent=1 // pred_check
      _
    $region23: #{tpu_custom_call.1} parent=1 // pred_check_branch
      %131 = sbr.rel (0) target = $region25
    $region24: #{tpu_custom_call.1} parent=1 // pred_region
      %132 = dma.done [#allocation4], 16
    $region25: #{tpu_custom_call.1} parent=1 // pred_fallthru
      _
    %133 = vsyncpa [#allocation3], 1
    %134 = vsyncpa [#allocation6], 1
    %135 = vsyncpa [#allocation4], 1

</llo_original>
